<compile_context>
chip_gen: v5e
topology: v5e:2x2
jax: 0.10.0
libtpu: 0.0.40
codegen_flags: <defaults>
</compile_context>

<pallas_src>
import jax
import jax.numpy as jnp
import numpy as np
from jax import lax
from jax.experimental import pallas as pl
from jax.experimental.pallas import tpu as pltpu

# ----------------------------- configuration --------------------------------
B = 2                    # batch
N_CLASSES = 4            # unused by the feature forward
CHANS = 8                # EEG channels (ch_num defaults to Chans)
SAMPLES = 64             # time samples; must be divisible by 32 (pool 4 then 8)
KERN_LEN = 16            # block1 temporal kernel length
KERN_LEN2 = 16           # block2 depthwise temporal kernel length (fixed)
F1 = 4
D = 2
F2 = 8
F1D = F1 * D
BN_EPS = 1e-5

PAD_L1 = KERN_LEN // 2 - 1       # block1 ZeroPad2d left (right = kL - kL//2)
PAD_L2 = 7                       # block2 ZeroPad2d (7, 8)
T1 = SAMPLES // 4                # width after block1 AvgPool(1, 4)   (=16)
T2 = T1 // 8                     # width after block2 AvgPool(1, 8)   (=2)
FDB = F1 * D * B                 # block1 row count  (fd-major, b-minor) (=16)
F2B = F2 * B                     # block2 row count  (f2-major, b-minor) (=16)

# The packed weight/bias slabs assume these all match (true for this config).
assert FDB == F2B == B * CHANS


# ------------------------------- fused kernel --------------------------------
def fused_kernel(x_ref, w_ref, b_ref, t1_ref, t2_ref, pool_ref, out_ref):
    """One grid step == one Siamese branch (block1 + block2), all in VMEM."""

    def elu(z):
        # exp only ever sees non-positive arguments (no overflow in untaken branch)
        return jnp.where(z > 0, z, jnp.exp(jnp.minimum(z, 0.0)) - 1.0)

    x = x_ref[0]                            # (B*CHANS, S)   rows = (b, c)
    w2p = w_ref[0, 0]                       # (FDB, B*CHANS) spatial conv, BN folded
    wpe = w_ref[0, 1]                       # (F2B, FDB)     pointwise conv, BN folded
    biases = b_ref[0]                       # (16, 2) f32
    bias1 = biases[:, 0:1]                  # (FDB, 1)
    bias2 = biases[:, 1:2]                  # (F2B, 1)
    t1 = t1_ref[0]                          # (F1, S, S)     bf16 temporal Toeplitz
    t2 = t2_ref[0]                          # (F1D, T1, T1)  bf16 depthwise Toeplitz
    pools = pool_ref[...]                   # (S + T1, T1)   f32
    p4 = pools[:SAMPLES, :]                 # (S, T1)        AvgPool(1,4) matrix
    p8 = pools[SAMPLES:, :T2]               # (T1, T2)       AvgPool(1,8) matrix

    # -------------------- block1 --------------------
    # Spatial depthwise conv first (BN1a/BN1b scales folded in -- order swap with
    # the temporal conv is valid, both are linear and BN between them is affine).
    u = jnp.dot(w2p, x, preferred_element_type=jnp.float32)            # (FDB, S)
    # Grouped temporal conv: per-F1 (S,S) Toeplitz with the ZeroPad baked in,
    # issued as ONE batched dot_general over F1 (no python loop / concat).
    u3 = u.reshape(F1, D * B, SAMPLES).astype(jnp.bfloat16)
    v3 = jnp.einsum('fms,fst->fmt', u3, t1,
                    preferred_element_type=jnp.float32)                # (F1, D*B, S)
    e1 = elu(v3.reshape(FDB, SAMPLES) + bias1)                         # BN shifts folded
    p1 = jnp.dot(e1, p4, preferred_element_type=jnp.float32)           # (FDB, T1)

    # -------------------- block2 --------------------
    # Depthwise (1,16) conv as a batched (T1,T1) Toeplitz over F1D channels.
    p13 = p1.reshape(F1D, B, T1).astype(jnp.bfloat16)
    h3 = jnp.einsum('gms,gst->gmt', p13, t2,
                    preferred_element_type=jnp.float32)                # (F1D, B, T1)
    # Pointwise (1,1) conv with BN2 scale folded; shift via bias2.
    y = jnp.dot(wpe, h3.reshape(F1D * B, T1),
                preferred_element_type=jnp.float32) + bias2            # (F2B, T1)
    e2 = elu(y)
    out_ref[0] = jnp.dot(e2, p8, preferred_element_type=jnp.float32)   # (F2B, T2)

    # NOTE: Dropout layers are identity in eval mode.


# --------------------------- host-side weight folding ------------------------
def _fold_bn(gamma, beta, mean, var):
    s = gamma / jnp.sqrt(var + BN_EPS)
    return s, beta - mean * s


def _toeplitz(w, length, pad_left, klen):
    """(C, klen) -> (C, length, length): zero-padded conv-as-matmul per channel."""
    s = np.arange(length)
    k = s[:, None] - s[None, :] + pad_left          # rows: input s, cols: output t
    valid = (k >= 0) & (k < klen)
    kc = np.clip(k, 0, klen - 1)
    return jnp.where(jnp.asarray(valid)[None], w[:, kc], 0.0)


def prepare_branch(pr):
    """Fold BatchNorms (eval) and restructure conv weights into matmul constants."""
    s1a, t1a = _fold_bn(pr['bn1a_gamma'], pr['bn1a_beta'], pr['bn1a_mean'], pr['bn1a_var'])
    s1b, t1b = _fold_bn(pr['bn1b_gamma'], pr['bn1b_beta'], pr['bn1b_mean'], pr['bn1b_var'])
    s2, t2s = _fold_bn(pr['bn2_gamma'], pr['bn2_beta'], pr['bn2_mean'], pr['bn2_var'])

    # Spatial depthwise conv weights with BN1a/BN1b scales folded in.
    w_spat = (pr['w2'] * s1a[:, None, None]).reshape(F1D, CHANS) * s1b[:, None]
    # BN1a shift passes through the spatial conv as sum_c w2[f,d,c]; then BN1b.
    csum = pr['w2'].sum(-1).reshape(F1D)
    bias1 = jnp.repeat(s1b * jnp.repeat(t1a, D) * csum + t1b, B)        # (FDB,)
    bias2 = jnp.repeat(t2s, B)                                          # (F2B,)
    biases = jnp.stack([bias1, bias2], axis=1)                          # (16, 2) f32

    eye_b = jnp.eye(B, dtype=jnp.float32)
    # Expand over batch (rows fd-major/b-minor, cols b-major/c-minor).
    w2p = jnp.einsum('fc,bB->fbBc', w_spat, eye_b).reshape(FDB, B * CHANS)
    # Pointwise conv with BN2 scale (rows f2-major/b-minor, cols fd-major/b-minor).
    wpe = jnp.einsum('og,bB->obgB', pr['wp'] * s2[:, None], eye_b).reshape(F2B, F1D * B)
    wmats = jnp.stack([w2p, wpe])                                       # (2, 16, 16) f32

    # Large conv-as-matmul constants shipped in bf16 (f32 accumulation in-kernel).
    toep1 = _toeplitz(pr['w1'], SAMPLES, PAD_L1, KERN_LEN).astype(jnp.bfloat16)
    toep2 = _toeplitz(pr['wd'], T1, PAD_L2, KERN_LEN2).astype(jnp.bfloat16)
    return wmats, biases, toep1, toep2


def _pool_constants():
    """AvgPool(1,4) and AvgPool(1,8) matrices packed into one lane-dense slab."""
    s = np.arange(SAMPLES)
    p4 = (s[:, None] // 4 == np.arange(T1)[None, :]).astype(np.float32) / 4.0
    t = np.arange(T1)
    p8 = (t[:, None] // 8 == np.arange(T2)[None, :]).astype(np.float32) / 8.0
    pools = np.zeros((SAMPLES + T1, T1), np.float32)
    pools[:SAMPLES, :] = p4
    pools[SAMPLES:, :T2] = p8
    return jnp.asarray(pools)


# --------------------------------- wrapper -----------------------------------
@jax.jit
def eegnet_siamese_forward(knowledge, data, params):
    # (B, 1, Chans, Samples) -> (B*Chans, Samples): (batch, channel) on sublanes,
    # time on the lane axis.
    kx = knowledge[:, 0].reshape(B * CHANS, SAMPLES)
    dx = data[:, 0].reshape(B * CHANS, SAMPLES)
    x_all = jnp.stack([kx, dx])                                   # (2, 16, S)

    kw, kb, kt1, kt2 = prepare_branch(params['k'])
    dw, db, dt1, dt2 = prepare_branch(params['d'])
    w_all = jnp.stack([kw, dw])                                   # (2, 2, 16, 16) f32
    b_all = jnp.stack([kb, db])                                   # (2, 16, 2)     f32
    t1_all = jnp.stack([kt1, dt1])                                # (2, F1, S, S)  bf16
    t2_all = jnp.stack([kt2, dt2])                                # (2, F1D,T1,T1) bf16
    pools = _pool_constants()                                     # (S+T1, T1)     f32

    out = pl.pallas_call(
        fused_kernel,
        out_shape=jax.ShapeDtypeStruct((2, F2B, T2), jnp.float32),
        grid=(2,),                                                # branch axis
        in_specs=[
            pl.BlockSpec((1, B * CHANS, SAMPLES), lambda i: (i, 0, 0)),
            pl.BlockSpec((1, 2, FDB, B * CHANS), lambda i: (i, 0, 0, 0)),
            pl.BlockSpec((1, FDB, 2), lambda i: (i, 0, 0)),
            pl.BlockSpec((1, F1, SAMPLES, SAMPLES), lambda i: (i, 0, 0, 0)),
            pl.BlockSpec((1, F1D, T1, T1), lambda i: (i, 0, 0, 0)),
            pl.BlockSpec((SAMPLES + T1, T1), lambda i: (0, 0)),   # shared, fetched once
        ],
        out_specs=pl.BlockSpec((1, F2B, T2), lambda i: (i, 0, 0)),
        compiler_params=pltpu.CompilerParams(
            dimension_semantics=("parallel",)),
    )(x_all, w_all, b_all, t1_all, t2_all, pools)

    # (2, F2*B, T2) -> (2, B, F2*T2): tiny relayout done outside the kernel.
    out = out.reshape(2, F2, B, T2).transpose(0, 2, 1, 3).reshape(2, B, F2 * T2)
    return out[0], out[1]


# ----------------------------- pure-JAX reference ----------------------------
def _bn_eval(x, gamma, beta, mean, var):
    shp = [1] * x.ndim
    shp[1] = -1
    return ((x - mean.reshape(shp)) / jnp.sqrt(var.reshape(shp) + BN_EPS)
            * gamma.reshape(shp) + beta.reshape(shp))


def _elu_ref(x):
    return jnp.where(x > 0, x, jnp.exp(jnp.minimum(x, 0.0)) - 1.0)


def reference_branch(x4, pr):
    w1 = pr['w1'].reshape(F1, 1, 1, KERN_LEN)
    h = lax.conv_general_dilated(
        x4, w1, (1, 1), padding=[(0, 0), (PAD_L1, KERN_LEN - KERN_LEN // 2)],
        dimension_numbers=('NCHW', 'OIHW', 'NCHW'))
    h = _bn_eval(h, pr['bn1a_gamma'], pr['bn1a_beta'], pr['bn1a_mean'], pr['bn1a_var'])
    w2 = pr['w2'].reshape(F1D, 1, CHANS, 1)
    h = lax.conv_general_dilated(
        h, w2, (1, 1), padding=[(0, 0), (0, 0)],
        dimension_numbers=('NCHW', 'OIHW', 'NCHW'), feature_group_count=F1)
    h = _bn_eval(h, pr['bn1b_gamma'], pr['bn1b_beta'], pr['bn1b_mean'], pr['bn1b_var'])
    h = _elu_ref(h)
    h = h.reshape(B, F1D, 1, T1, 4).mean(-1)
    wd = pr['wd'].reshape(F1D, 1, 1, KERN_LEN2)
    h = lax.conv_general_dilated(
        h, wd, (1, 1), padding=[(0, 0), (PAD_L2, 8)],
        dimension_numbers=('NCHW', 'OIHW', 'NCHW'), feature_group_count=F1D)
    h = jnp.einsum('oc,bcht->boht', pr['wp'], h)
    h = _bn_eval(h, pr['bn2_gamma'], pr['bn2_beta'], pr['bn2_mean'], pr['bn2_var'])
    h = _elu_ref(h)
    h = h.reshape(B, F2, 1, T2, 8).mean(-1)
    return h.reshape(B, -1)


# ----------------------------------- main -------------------------------------
def make_branch_params(key, off):
    ks = jax.random.split(key, 4)

    def bn(n, o):
        idx = jnp.arange(n, dtype=jnp.float32)
        return dict(gamma=1.0 + 0.1 * idx / n + 0.01 * o,
                    beta=0.02 * idx - 0.03 * o,
                    mean=0.01 * idx + 0.005 * o,
                    var=1.0 + 0.05 * idx / n)

    pr = {
        'w1': 0.1 * jax.random.normal(ks[0], (F1, KERN_LEN), jnp.float32),
        'w2': 0.1 * jax.random.normal(ks[1], (F1, D, CHANS), jnp.float32),
        'wd': 0.1 * jax.random.normal(ks[2], (F1D, KERN_LEN2), jnp.float32),
        'wp': 0.1 * jax.random.normal(ks[3], (F2, F1D), jnp.float32),
    }
    for name, n, o in [('bn1a', F1, off), ('bn1b', F1D, off + 1), ('bn2', F2, off + 2)]:
        for kk, vv in bn(n, o).items():
            pr[f'{name}_{kk}'] = vv
    return pr


if __name__ == "__main__":
    root = jax.random.PRNGKey(0)
    k_know, k_data, k_pk, k_pd = jax.random.split(root, 4)

    knowledge = jax.random.normal(k_know, (B, 1, CHANS, SAMPLES), jnp.float32)
    data = jax.random.normal(k_data, (B, 1, CHANS, SAMPLES), jnp.float32)
    params = {'k': make_branch_params(k_pk, 0), 'd': make_branch_params(k_pd, 3)}

    k_out, d_out = eegnet_siamese_forward(knowledge, data, params)
    k_out = jax.block_until_ready(k_out)
    d_out = jax.block_until_ready(d_out)

    k_ref = reference_branch(knowledge, params['k'])
    d_ref = reference_branch(data, params['d'])
    # bf16 Toeplitz constants + bf16 dot operands -> relaxed tolerance (review note)
    np.testing.assert_allclose(np.asarray(k_out), np.asarray(k_ref), rtol=1e-2, atol=1e-2)
    np.testing.assert_allclose(np.asarray(d_out), np.asarray(d_ref), rtol=1e-2, atol=1e-2)

    assert k_out.shape == (B, F2 * T2)
    assert d_out.shape == (B, F2 * T2)
    print("KERNEL_OK")
</pallas_src>

<mosaic_0001>
module attributes {stable_mosaic.version = 11 : i64} {
  func.func @fused_kernel(%arg0: i32, %arg1: memref<1x16x64xf32, #tpu.memory_space<vmem>>, %arg2: memref<1x2x16x16xf32, #tpu.memory_space<vmem>>, %arg3: memref<1x16x2xf32, #tpu.memory_space<vmem>>, %arg4: memref<1x4x64x64xbf16, #tpu.memory_space<vmem>>, %arg5: memref<1x8x16x16xbf16, #tpu.memory_space<vmem>>, %arg6: memref<80x16xf32, #tpu.memory_space<vmem>>, %arg7: memref<1x16x2xf32, #tpu.memory_space<vmem>>) attributes {dimension_semantics = [#tpu.dimension_semantics<parallel>], iteration_bounds = array<i64: 2>, scalar_prefetch = 0 : i64, scratch_operands = 0 : i64, tpu.core_type = #tpu.core_type<tc>, window_params = [{transform_indices = @transform_0, window_bounds = array<i64: 1, 16, 64>}, {transform_indices = @transform_1, window_bounds = array<i64: 1, 2, 16, 16>}, {transform_indices = @transform_2, window_bounds = array<i64: 1, 16, 2>}, {transform_indices = @transform_3, window_bounds = array<i64: 1, 4, 64, 64>}, {transform_indices = @transform_4, window_bounds = array<i64: 1, 8, 16, 16>}, {pipeline_mode = #tpu.pipeline_mode<synchronous>, transform_indices = @transform_5, window_bounds = array<i64: 80, 16>}, {transform_indices = @transform_6, window_bounds = array<i64: 1, 16, 2>}]} {
    %c0 = arith.constant 0 : index
    %c0_0 = arith.constant 0 : index
    %c0_1 = arith.constant 0 : index
    %0 = vector.load %arg1[%c0, %c0_0, %c0_1] : memref<1x16x64xf32, #tpu.memory_space<vmem>>, vector<1x16x64xf32>
    %1 = vector.shape_cast %0 : vector<1x16x64xf32> to vector<16x64xf32>
    %c0_2 = arith.constant 0 : index
    %c0_3 = arith.constant 0 : index
    %c0_4 = arith.constant 0 : index
    %c0_5 = arith.constant 0 : index
    %2 = vector.load %arg2[%c0_2, %c0_3, %c0_4, %c0_5] : memref<1x2x16x16xf32, #tpu.memory_space<vmem>>, vector<1x1x16x16xf32>
    %3 = vector.shape_cast %2 : vector<1x1x16x16xf32> to vector<16x16xf32>
    %c0_6 = arith.constant 0 : index
    %c1 = arith.constant 1 : index
    %c0_7 = arith.constant 0 : index
    %c0_8 = arith.constant 0 : index
    %4 = vector.load %arg2[%c0_6, %c1, %c0_7, %c0_8] : memref<1x2x16x16xf32, #tpu.memory_space<vmem>>, vector<1x1x16x16xf32>
    %5 = vector.shape_cast %4 : vector<1x1x16x16xf32> to vector<16x16xf32>
    %c0_9 = arith.constant 0 : index
    %c0_10 = arith.constant 0 : index
    %c0_11 = arith.constant 0 : index
    %6 = vector.load %arg3[%c0_9, %c0_10, %c0_11] : memref<1x16x2xf32, #tpu.memory_space<vmem>>, vector<1x16x2xf32>
    %7 = vector.shape_cast %6 : vector<1x16x2xf32> to vector<16x2xf32>
    %8 = vector.extract_strided_slice %7 {offsets = [0, 0], sizes = [16, 1], strides = [1, 1]} : vector<16x2xf32> to vector<16x1xf32>
    %9 = vector.extract_strided_slice %7 {offsets = [0, 1], sizes = [16, 1], strides = [1, 1]} : vector<16x2xf32> to vector<16x1xf32>
    %c0_12 = arith.constant 0 : index
    %c0_13 = arith.constant 0 : index
    %c0_14 = arith.constant 0 : index
    %c0_15 = arith.constant 0 : index
    %10 = vector.load %arg4[%c0_12, %c0_13, %c0_14, %c0_15] : memref<1x4x64x64xbf16, #tpu.memory_space<vmem>>, vector<1x4x64x64xbf16>
    %11 = vector.shape_cast %10 : vector<1x4x64x64xbf16> to vector<4x64x64xbf16>
    %c0_16 = arith.constant 0 : index
    %c0_17 = arith.constant 0 : index
    %c0_18 = arith.constant 0 : index
    %c0_19 = arith.constant 0 : index
    %12 = vector.load %arg5[%c0_16, %c0_17, %c0_18, %c0_19] : memref<1x8x16x16xbf16, #tpu.memory_space<vmem>>, vector<1x8x16x16xbf16>
    %13 = vector.shape_cast %12 : vector<1x8x16x16xbf16> to vector<8x16x16xbf16>
    %c0_20 = arith.constant 0 : index
    %c0_21 = arith.constant 0 : index
    %14 = vector.load %arg6[%c0_20, %c0_21] : memref<80x16xf32, #tpu.memory_space<vmem>>, vector<80x16xf32>
    %15 = vector.extract_strided_slice %14 {offsets = [0, 0], sizes = [64, 16], strides = [1, 1]} : vector<80x16xf32> to vector<64x16xf32>
    %16 = vector.extract_strided_slice %14 {offsets = [64, 0], sizes = [16, 2], strides = [1, 1]} : vector<80x16xf32> to vector<16x2xf32>
    %cst = arith.constant dense<0.000000e+00> : vector<16x64xf32>
    %17 = tpu.matmul %3, %1, %cst {dimension_numbers = #tpu.dot_dimension_numbers<[1], [0], [0], [1], [0, 0, 1, 1], [], []>} : vector<16x16xf32>, vector<16x64xf32>, vector<16x64xf32> -> vector<16x64xf32>
    %18 = vector.shape_cast %17 : vector<16x64xf32> to vector<4x4x64xf32>
    %19 = arith.truncf %18 : vector<4x4x64xf32> to vector<4x4x64xbf16>
    "tpu.trace_start"() <{level = 10 : i32, message = "fms,fst->fmt"}> : () -> ()
    %cst_22 = arith.constant dense<0.000000e+00> : vector<4x4x64xf32>
    %20 = tpu.matmul %19, %11, %cst_22 {dimension_numbers = #tpu.dot_dimension_numbers<[2], [1], [1], [2], [0, 0, 0, 1, 1, 2], [0], [0]>} : vector<4x4x64xbf16>, vector<4x64x64xbf16>, vector<4x4x64xf32> -> vector<4x4x64xf32>
    "tpu.trace_stop"() : () -> ()
    %21 = vector.shape_cast %20 : vector<4x4x64xf32> to vector<16x64xf32>
    %22 = vector.broadcast %8 : vector<16x1xf32> to vector<16x64xf32>
    %23 = arith.addf %21, %22 : vector<16x64xf32>
    %cst_23 = arith.constant 0.000000e+00 : f32
    %24 = vector.broadcast %cst_23 : f32 to vector<16x64xf32>
    %25 = arith.cmpf ogt, %23, %24 : vector<16x64xf32>
    %cst_24 = arith.constant 0.000000e+00 : f32
    %26 = vector.broadcast %cst_24 : f32 to vector<16x64xf32>
    %27 = arith.minimumf %23, %26 : vector<16x64xf32>
    %28 = math.exp %27 : vector<16x64xf32>
    %cst_25 = arith.constant 1.000000e+00 : f32
    %29 = vector.broadcast %cst_25 : f32 to vector<16x64xf32>
    %30 = arith.subf %28, %29 : vector<16x64xf32>
    %31 = arith.select %25, %23, %30 : vector<16x64xi1>, vector<16x64xf32>
    %cst_26 = arith.constant dense<0.000000e+00> : vector<16x16xf32>
    %32 = tpu.matmul %31, %15, %cst_26 {dimension_numbers = #tpu.dot_dimension_numbers<[1], [0], [0], [1], [0, 0, 1, 1], [], []>} : vector<16x64xf32>, vector<64x16xf32>, vector<16x16xf32> -> vector<16x16xf32>
    %33 = vector.shape_cast %32 : vector<16x16xf32> to vector<8x2x16xf32>
    %34 = arith.truncf %33 : vector<8x2x16xf32> to vector<8x2x16xbf16>
    "tpu.trace_start"() <{level = 10 : i32, message = "gms,gst->gmt"}> : () -> ()
    %cst_27 = arith.constant dense<0.000000e+00> : vector<8x2x16xf32>
    %35 = tpu.matmul %34, %13, %cst_27 {dimension_numbers = #tpu.dot_dimension_numbers<[2], [1], [1], [2], [0, 0, 0, 1, 1, 2], [0], [0]>} : vector<8x2x16xbf16>, vector<8x16x16xbf16>, vector<8x2x16xf32> -> vector<8x2x16xf32>
    "tpu.trace_stop"() : () -> ()
    %36 = vector.shape_cast %35 : vector<8x2x16xf32> to vector<16x16xf32>
    %cst_28 = arith.constant dense<0.000000e+00> : vector<16x16xf32>
    %37 = tpu.matmul %5, %36, %cst_28 {dimension_numbers = #tpu.dot_dimension_numbers<[1], [0], [0], [1], [0, 0, 1, 1], [], []>} : vector<16x16xf32>, vector<16x16xf32>, vector<16x16xf32> -> vector<16x16xf32>
    %38 = vector.broadcast %9 : vector<16x1xf32> to vector<16x16xf32>
    %39 = arith.addf %37, %38 : vector<16x16xf32>
    %cst_29 = arith.constant 0.000000e+00 : f32
    %40 = vector.broadcast %cst_29 : f32 to vector<16x16xf32>
    %41 = arith.cmpf ogt, %39, %40 : vector<16x16xf32>
    %cst_30 = arith.constant 0.000000e+00 : f32
    %42 = vector.broadcast %cst_30 : f32 to vector<16x16xf32>
    %43 = arith.minimumf %39, %42 : vector<16x16xf32>
    %44 = math.exp %43 : vector<16x16xf32>
    %cst_31 = arith.constant 1.000000e+00 : f32
    %45 = vector.broadcast %cst_31 : f32 to vector<16x16xf32>
    %46 = arith.subf %44, %45 : vector<16x16xf32>
    %47 = arith.select %41, %39, %46 : vector<16x16xi1>, vector<16x16xf32>
    %cst_32 = arith.constant dense<0.000000e+00> : vector<16x2xf32>
    %48 = tpu.matmul %47, %16, %cst_32 {dimension_numbers = #tpu.dot_dimension_numbers<[1], [0], [0], [1], [0, 0, 1, 1], [], []>} : vector<16x16xf32>, vector<16x2xf32>, vector<16x2xf32> -> vector<16x2xf32>
    %c0_33 = arith.constant 0 : index
    %c0_34 = arith.constant 0 : index
    %c0_35 = arith.constant 0 : index
    %49 = vector.load %arg7[%c0_33, %c0_34, %c0_35] : memref<1x16x2xf32, #tpu.memory_space<vmem>>, vector<1x16x2xf32>
    %50 = vector.shape_cast %49 : vector<1x16x2xf32> to vector<16x2xf32>
    %51 = vector.shape_cast %48 : vector<16x2xf32> to vector<1x16x2xf32>
    tpu.vector_store %arg7[%c0_33, %c0_34, %c0_35], %51 {strides = array<i32>} : memref<1x16x2xf32, #tpu.memory_space<vmem>>, vector<1x16x2xf32>,
    return
  }
  func.func @transform_0(%arg0: i32) -> (i32, i32, i32) {
    %c0_i32 = arith.constant 0 : i32
    %c0_i32_0 = arith.constant 0 : i32
    %c0_i32_1 = arith.constant 0 : i32
    return %arg0, %c0_i32, %c0_i32_0 : i32, i32, i32
  }
  func.func @transform_1(%arg0: i32) -> (i32, i32, i32, i32) {
    %c0_i32 = arith.constant 0 : i32
    %c0_i32_0 = arith.constant 0 : i32
    %c0_i32_1 = arith.constant 0 : i32
    %c0_i32_2 = arith.constant 0 : i32
    return %arg0, %c0_i32, %c0_i32_0, %c0_i32_1 : i32, i32, i32, i32
  }
  func.func @transform_2(%arg0: i32) -> (i32, i32, i32) {
    %c0_i32 = arith.constant 0 : i32
    %c0_i32_0 = arith.constant 0 : i32
    %c0_i32_1 = arith.constant 0 : i32
    return %arg0, %c0_i32, %c0_i32_0 : i32, i32, i32
  }
  func.func @transform_3(%arg0: i32) -> (i32, i32, i32, i32) {
    %c0_i32 = arith.constant 0 : i32
    %c0_i32_0 = arith.constant 0 : i32
    %c0_i32_1 = arith.constant 0 : i32
    %c0_i32_2 = arith.constant 0 : i32
    return %arg0, %c0_i32, %c0_i32_0, %c0_i32_1 : i32, i32, i32, i32
  }
  func.func @transform_4(%arg0: i32) -> (i32, i32, i32, i32) {
    %c0_i32 = arith.constant 0 : i32
    %c0_i32_0 = arith.constant 0 : i32
    %c0_i32_1 = arith.constant 0 : i32
    %c0_i32_2 = arith.constant 0 : i32
    return %arg0, %c0_i32, %c0_i32_0, %c0_i32_1 : i32, i32, i32, i32
  }
  func.func @transform_5(%arg0: i32) -> (i32, i32) {
    %c0_i32 = arith.constant 0 : i32
    %c0_i32_0 = arith.constant 0 : i32
    %c0_i32_1 = arith.constant 0 : i32
    return %c0_i32, %c0_i32_0 : i32, i32
  }
  func.func @transform_6(%arg0: i32) -> (i32, i32, i32) {
    %c0_i32 = arith.constant 0 : i32
    %c0_i32_0 = arith.constant 0 : i32
    %c0_i32_1 = arith.constant 0 : i32
    return %arg0, %c0_i32, %c0_i32_0 : i32, i32, i32
  }
}

</mosaic_0001>

<llo_original>
// kernel: squeeze.6
$region0: #{squeeze.6}
  %s0 = inlined_call_operand.vmem [shape: f32[1,2,8,2], index: 0, kind: input, shape index: {}]
  %s1 = inlined_call_operand.hbm [shape: f32[2,16], index: 1, kind: output, shape index: {}]
  $region1: #{squeeze.6} parent=0
    #allocation0 [shape = 'u8[1024]{0}', space=vmem, size = 0x400, scoped, tag = 'operand span for operand 1']
    #allocation1 [shape = 's32[1]{0}', space=sflag, size = 0x4, scoped, tag = 'scoped memory for squeeze.6']
    #allocation2 [shape = 'u8[4096]{0}', space=vmem, size = 0x1000, scoped, tag = 'scoped mem for output reshape']
    %2 = vsyncpa [#allocation1], 0
    %s3 = smov 3
    %v4 = vld [vmem:[%s0] ss:$8 sm:%s3]
    %vm5 = vcmask 15360
    %6 = vst.msk [vmem:[#allocation2] sm:$0x3] %vm5, %v4
    %s7 = scalar_lea.vmem %s0, 7
    %s8 = smov 3
    %v9 = vld [vmem:[%s7] ss:$8 sm:%s8]
    %10 = vrot.lane.b32.xlu0 %v9, 14
    %v11 = vpop.permute.xlu0 %10
    %vm12 = vcmask 130160
    %13 = vst.msk [vmem:[#allocation2] sm:$0x3] %vm12, %v11
    %s14 = scalar_lea.vmem %s0, 6
    %s15 = smov 3
    %v16 = vld [vmem:[%s14] ss:$8 sm:%s15]
    %17 = vrot.lane.b32.xlu0 %v16, 12
    %v18 = vpop.permute.xlu0 %17
    %vm19 = vcmask 113760
    %20 = vst.msk [vmem:[#allocation2] sm:$0x3] %vm19, %v18
    %s21 = scalar_lea.vmem %s0, 5
    %s22 = smov 3
    %v23 = vld [vmem:[%s21] ss:$8 sm:%s22]
    %24 = vrot.lane.b32.xlu0 %v23, 10
    %v25 = vpop.permute.xlu0 %24
    %vm26 = vcmask 97360
    %27 = vst.msk [vmem:[#allocation2] sm:$0x3] %vm26, %v25
    %s28 = scalar_lea.vmem %s0, 4
    %s29 = smov 3
    %v30 = vld [vmem:[%s28] ss:$8 sm:%s29]
    %31 = vrot.lane.b32.xlu0 %v30, 8
    %v32 = vpop.permute.xlu0 %31
    %vm33 = vcmask 80960
    %34 = vst.msk [vmem:[#allocation2] sm:$0x3] %vm33, %v32
    %s35 = scalar_lea.vmem %s0, 3
    %s36 = smov 3
    %v37 = vld [vmem:[%s35] ss:$8 sm:%s36]
    %38 = vrot.lane.b32.xlu0 %v37, 6
    %v39 = vpop.permute.xlu0 %38
    %vm40 = vcmask 64560
    %41 = vst.msk [vmem:[#allocation2] sm:$0x3] %vm40, %v39
    %s42 = scalar_lea.vmem %s0, 2
    %s43 = smov 3
    %v44 = vld [vmem:[%s42] ss:$8 sm:%s43]
    %45 = vrot.lane.b32.xlu0 %v44, 4
    %v46 = vpop.permute.xlu0 %45
    %vm47 = vcmask 48160
    %48 = vst.msk [vmem:[#allocation2] sm:$0x3] %vm47, %v46
    %s49 = scalar_lea.vmem %s0, 1
    %s50 = smov 3
    %v51 = vld [vmem:[%s49] ss:$8 sm:%s50]
    %52 = vrot.lane.b32.xlu0 %v51, 2
    %v53 = vpop.permute.xlu0 %52
    %vm54 = vcmask 31760
    %55 = vst.msk [vmem:[#allocation2] sm:$0x3] %vm54, %v53
    %s57 = ssub.s32 4, 1
    %v58 = vld [vmem:[#allocation2] sm:%s57]
    %s60 = ssub.s32 4, 1
    %61 = vst [vmem:[#allocation0] sm:%s60] %v58
    %63 = vsyncadd [#allocation1], 0
    %s65 = sshll.u32 [#allocation0], 4
    %s66 = int_to_ptr.vmem [resolvable:$true] %s65
    %s67 = sshll.u32 %s1, 4
    %s68 = int_to_ptr.hbm [resolvable:$true] %s67
    %70 = dma.vmem_to_hbm [thread:$0]  %s66, 32, %s68, [#allocation1]
    %72 = dma.done [#allocation1], 32
    %73 = vsyncpa [#allocation1], 1

// kernel: eegnet_siamese_forward.1
$region0: #{eegnet_siamese_forward.1}
  #allocation0 [shape = 'u32[]', space=smem, size = 0x4, offset = 0x4, fixed_abs, tag = 'smem constant byte address 0x4 - core index']
  #allocation1 [shape = 'u32[72,128]{1,0:T(1,128)}', space=vmem, size = 0x9000, scoped, tag = 'internal scratch']
  %s0 = inlined_call_operand.vmem [shape: f32[2,16,64], index: 0, kind: input, shape index: {}]
  %s1 = inlined_call_operand.vmem [shape: f32[2,2,16,16], index: 1, kind: input, shape index: {}]
  %s2 = inlined_call_operand.vmem [shape: f32[2,16,2], index: 2, kind: input, shape index: {}]
  %s3 = inlined_call_operand.vmem [shape: bf16[2,4,64,64], index: 3, kind: input, shape index: {}]
  %s4 = inlined_call_operand.vmem [shape: bf16[2,8,16,16], index: 4, kind: input, shape index: {}]
  %s5 = inlined_call_operand.vmem [shape: f32[80,16], index: 5, kind: input, shape index: {}]
  %s6 = inlined_call_operand.vmem [shape: f32[2,16,2], index: 6, kind: output, shape index: {}]
  %s7 = sld [smem:[#allocation0]]
  $region57: #{eegnet_siamese_forward.1} parent=0
    _
  %s9 = ssub.s32 1, %s7
  %s10 = scalar_select 0, %s9, %s7
  loop: start=0, step=1, limit=4
  $region2: #{eegnet_siamese_forward.1} parent=0 // loop_pre_header
    _
  $region3: #{eegnet_siamese_forward.1} parent=0 // loop_header
    %s12 = sphi 0, %s16
    %p13 = scmp.ge.s32.totalorder %s12, 4
    %s22 = sphi 0, %s24
    %s25 = sphi 0, %s22
    %s26 = sphi 0, %s25
    %s42 = sphi 0, %s26
    %s48 = sphi 0, %s50
    %s51 = sphi 0, %s48
    %s52 = sphi 0, %s51
    %s68 = sphi 0, %s52
    %s74 = sphi 0, %s76
    %s77 = sphi 0, %s74
    %s78 = sphi 0, %s77
    %s94 = sphi 0, %s78
    %s100 = sphi 0, %s102
    %s103 = sphi 0, %s100
    %s104 = sphi 0, %s103
    %s120 = sphi 0, %s104
    %s126 = sphi 0, %s128
    %s129 = sphi 0, %s126
    %s130 = sphi 0, %s129
    %s146 = sphi 0, %s130
    %s150 = sphi 0, %s150
    %s152 = sphi 0, %s150
    %s153 = sphi 0, %s152
    %s167 = sphi 0, %s153
    %s173 = sphi 0, %s175
    %s176 = sphi 0, %s173
    %s177 = sphi 0, %s176
    %s193 = sphi 0, %s177
  $region4: #{eegnet_siamese_forward.1} parent=0 // loop_header_branch
    %15 = sbr.rel (%p13) target = $region8
  $region5: #{eegnet_siamese_forward.1} parent=0 // loop_body
    %s17 = ssub.s32 %s12, 1
    %s18 = ssub.s32 %s12, 2
    %s19 = sadd.s32 %s12, 1
    %s20 = ssub.s32 %s12, %s19
    %p21 = scmp.eq.s32.totalorder %s20, 0
    %s23 = sadd.s32 %s22, 1
    %s24 = scalar_select %p21, %s22, %s23
    %p27 = pneg %p21
    %p28 = scmp.eq.s32.totalorder %s12, 1
    %p29 = por %p27, %p28
    %p30 = scmp.ne.s32.totalorder %s22, %s25
    %p31 = scmp.eq.s32.totalorder %s12, 0
    %p32 = por %p30, %p31
    %p33 = scmp.ne.s32.totalorder %s22, %s25
    %p34 = scmp.eq.s32.totalorder %s17, 1
    %p35 = por %p33, %p34
    %p36 = scmp.ne.s32.totalorder %s25, %s26
    %p37 = scmp.eq.s32.totalorder %s17, 0
    %p38 = por %p36, %p37
    %p39 = scmp.ne.s32.totalorder %s25, %s26
    %p40 = scmp.eq.s32.totalorder %s18, 1
    %p41 = por %p39, %p40
    %p43 = scmp.ne.s32.totalorder %s26, %s42
    %p44 = scmp.eq.s32.totalorder %s18, 0
    %p45 = por %p43, %p44
    %s46 = ssub.s32 %s12, %s19
    %p47 = scmp.eq.s32.totalorder %s46, 0
    %s49 = sadd.s32 %s48, 1
    %s50 = scalar_select %p47, %s48, %s49
    %p53 = pneg %p47
    %p54 = scmp.eq.s32.totalorder %s12, 1
    %p55 = por %p53, %p54
    %p56 = scmp.ne.s32.totalorder %s48, %s51
    %p57 = scmp.eq.s32.totalorder %s12, 0
    %p58 = por %p56, %p57
    %p59 = scmp.ne.s32.totalorder %s48, %s51
    %p60 = scmp.eq.s32.totalorder %s17, 1
    %p61 = por %p59, %p60
    %p62 = scmp.ne.s32.totalorder %s51, %s52
    %p63 = scmp.eq.s32.totalorder %s17, 0
    %p64 = por %p62, %p63
    %p65 = scmp.ne.s32.totalorder %s51, %s52
    %p66 = scmp.eq.s32.totalorder %s18, 1
    %p67 = por %p65, %p66
    %p69 = scmp.ne.s32.totalorder %s52, %s68
    %p70 = scmp.eq.s32.totalorder %s18, 0
    %p71 = por %p69, %p70
    %s72 = ssub.s32 %s12, %s19
    %p73 = scmp.eq.s32.totalorder %s72, 0
    %s75 = sadd.s32 %s74, 1
    %s76 = scalar_select %p73, %s74, %s75
    %p79 = pneg %p73
    %p80 = scmp.eq.s32.totalorder %s12, 1
    %p81 = por %p79, %p80
    %p82 = scmp.ne.s32.totalorder %s74, %s77
    %p83 = scmp.eq.s32.totalorder %s12, 0
    %p84 = por %p82, %p83
    %p85 = scmp.ne.s32.totalorder %s74, %s77
    %p86 = scmp.eq.s32.totalorder %s17, 1
    %p87 = por %p85, %p86
    %p88 = scmp.ne.s32.totalorder %s77, %s78
    %p89 = scmp.eq.s32.totalorder %s17, 0
    %p90 = por %p88, %p89
    %p91 = scmp.ne.s32.totalorder %s77, %s78
    %p92 = scmp.eq.s32.totalorder %s18, 1
    %p93 = por %p91, %p92
    %p95 = scmp.ne.s32.totalorder %s78, %s94
    %p96 = scmp.eq.s32.totalorder %s18, 0
    %p97 = por %p95, %p96
    %s98 = ssub.s32 %s12, %s19
    %p99 = scmp.eq.s32.totalorder %s98, 0
    %s101 = sadd.s32 %s100, 1
    %s102 = scalar_select %p99, %s100, %s101
    %p105 = pneg %p99
    %p106 = scmp.eq.s32.totalorder %s12, 1
    %p107 = por %p105, %p106
    %p108 = scmp.ne.s32.totalorder %s100, %s103
    %p109 = scmp.eq.s32.totalorder %s12, 0
    %p110 = por %p108, %p109
    %p111 = scmp.ne.s32.totalorder %s100, %s103
    %p112 = scmp.eq.s32.totalorder %s17, 1
    %p113 = por %p111, %p112
    %p114 = scmp.ne.s32.totalorder %s103, %s104
    %p115 = scmp.eq.s32.totalorder %s17, 0
    %p116 = por %p114, %p115
    %p117 = scmp.ne.s32.totalorder %s103, %s104
    %p118 = scmp.eq.s32.totalorder %s18, 1
    %p119 = por %p117, %p118
    %p121 = scmp.ne.s32.totalorder %s104, %s120
    %p122 = scmp.eq.s32.totalorder %s18, 0
    %p123 = por %p121, %p122
    %s124 = ssub.s32 %s12, %s19
    %p125 = scmp.eq.s32.totalorder %s124, 0
    %s127 = sadd.s32 %s126, 1
    %s128 = scalar_select %p125, %s126, %s127
    %p131 = pneg %p125
    %p132 = scmp.eq.s32.totalorder %s12, 1
    %p133 = por %p131, %p132
    %p134 = scmp.ne.s32.totalorder %s126, %s129
    %p135 = scmp.eq.s32.totalorder %s12, 0
    %p136 = por %p134, %p135
    %p137 = scmp.ne.s32.totalorder %s126, %s129
    %p138 = scmp.eq.s32.totalorder %s17, 1
    %p139 = por %p137, %p138
    %p140 = scmp.ne.s32.totalorder %s129, %s130
    %p141 = scmp.eq.s32.totalorder %s17, 0
    %p142 = por %p140, %p141
    %p143 = scmp.ne.s32.totalorder %s129, %s130
    %p144 = scmp.eq.s32.totalorder %s18, 1
    %p145 = por %p143, %p144
    %p147 = scmp.ne.s32.totalorder %s130, %s146
    %p148 = scmp.eq.s32.totalorder %s18, 0
    %p149 = por %p147, %p148
    %s151 = sadd.s32 %s150, 1
    %p154 = scmp.eq.s32.totalorder %s12, 1
    %p155 = scmp.ne.s32.totalorder %s150, %s152
    %p156 = scmp.eq.s32.totalorder %s12, 0
    %p157 = por %p155, %p156
    %p158 = scmp.ne.s32.totalorder %s150, %s152
    %p159 = scmp.eq.s32.totalorder %s17, 1
    %p160 = por %p158, %p159
    %p161 = scmp.ne.s32.totalorder %s152, %s153
    %p162 = scmp.eq.s32.totalorder %s17, 0
    %p163 = por %p161, %p162
    %p164 = scmp.ne.s32.totalorder %s152, %s153
    %p165 = scmp.eq.s32.totalorder %s18, 1
    %p166 = por %p164, %p165
    %p168 = scmp.ne.s32.totalorder %s153, %s167
    %p169 = scmp.eq.s32.totalorder %s18, 0
    %p170 = por %p168, %p169
    %s171 = ssub.s32 %s12, %s19
    %p172 = scmp.eq.s32.totalorder %s171, 0
    %s174 = sadd.s32 %s173, 1
    %s175 = scalar_select %p172, %s173, %s174
    %p178 = pneg %p172
    %p179 = scmp.eq.s32.totalorder %s12, 1
    %p180 = por %p178, %p179
    %p181 = scmp.ne.s32.totalorder %s173, %s176
    %p182 = scmp.eq.s32.totalorder %s12, 0
    %p183 = por %p181, %p182
    %p184 = scmp.ne.s32.totalorder %s173, %s176
    %p185 = scmp.eq.s32.totalorder %s17, 1
    %p186 = por %p184, %p185
    %p187 = scmp.ne.s32.totalorder %s176, %s177
    %p188 = scmp.eq.s32.totalorder %s17, 0
    %p189 = por %p187, %p188
    %p190 = scmp.ne.s32.totalorder %s176, %s177
    %p191 = scmp.eq.s32.totalorder %s18, 1
    %p192 = por %p190, %p191
    %p194 = scmp.ne.s32.totalorder %s177, %s193
    %p195 = scmp.eq.s32.totalorder %s18, 0
    %p196 = por %p194, %p195
    %p197 = scmp.le.s32.totalorder 1, %s12
    %p198 = scmp.lt.s32.totalorder %s12, 3
    %p199 = pnand %p197, %p198
    %p200 = pneg %p199
    // Predicated region
    $region9: #{eegnet_siamese_forward.1} parent=5 // pred_check
      _
    $region10: #{eegnet_siamese_forward.1} parent=5 // pred_check_branch
      %202 = sbr.rel (%p199) target = $region12
    $region11: #{eegnet_siamese_forward.1} parent=5 // pred_region
      %s203 = ssub.s32 %s12, 1
      // Predicated region
      $region13: #{eegnet_siamese_forward.1} parent=11 // pred_check
        %p204 = pneg %p163
      $region14: #{eegnet_siamese_forward.1} parent=11 // pred_check_branch
        %206 = sbr.rel (%p204) target = $region16
      $region15: #{eegnet_siamese_forward.1} parent=11 // pred_region
        _
      $region16: #{eegnet_siamese_forward.1} parent=11 // pred_fallthru
        _
    $region12: #{eegnet_siamese_forward.1} parent=5 // pred_fallthru
      _
    %p207 = scmp.lt.s32.totalorder %s12, 2
    // Predicated region
    $region17: #{eegnet_siamese_forward.1} parent=5 // pred_check
      %p208 = pneg %p207
    $region18: #{eegnet_siamese_forward.1} parent=5 // pred_check_branch
      %210 = sbr.rel (%p208) target = $region20
    $region19: #{eegnet_siamese_forward.1} parent=5 // pred_region
      // Predicated region
      $region21: #{eegnet_siamese_forward.1} parent=19 // pred_check
        %p211 = pneg %p32
      $region22: #{eegnet_siamese_forward.1} parent=19 // pred_check_branch
        %213 = sbr.rel (%p211) target = $region24
      $region23: #{eegnet_siamese_forward.1} parent=19 // pred_region
        %p214 = scmp.lt.s32.totalorder %s12, 1
        %s215 = scalar_select %p214, %s12, 1
        %s216 = smul.addr %s215, 2
        %s217 = smul.addr %s216, 8
        %s218 = scalar_lea.vmem %s0, %s217
      $region24: #{eegnet_siamese_forward.1} parent=19 // pred_fallthru
        _
      // Predicated region
      $region25: #{eegnet_siamese_forward.1} parent=19 // pred_check
        %p219 = pneg %p58
      $region26: #{eegnet_siamese_forward.1} parent=19 // pred_check_branch
        %221 = sbr.rel (%p219) target = $region28
      $region27: #{eegnet_siamese_forward.1} parent=19 // pred_region
        %p222 = scmp.lt.s32.totalorder %s12, 1
        %s223 = scalar_select %p222, %s12, 1
        %s224 = smul.addr %s223, 4
        %s225 = smul.addr %s224, 8
        %s226 = scalar_lea.vmem %s1, %s225
      $region28: #{eegnet_siamese_forward.1} parent=19 // pred_fallthru
        _
      // Predicated region
      $region29: #{eegnet_siamese_forward.1} parent=19 // pred_check
        %p227 = pneg %p84
      $region30: #{eegnet_siamese_forward.1} parent=19 // pred_check_branch
        %229 = sbr.rel (%p227) target = $region32
      $region31: #{eegnet_siamese_forward.1} parent=19 // pred_region
        %p230 = scmp.lt.s32.totalorder %s12, 1
        %s231 = scalar_select %p230, %s12, 1
        %s232 = smul.addr %s231, 2
        %s233 = smul.addr %s232, 8
        %s234 = scalar_lea.vmem %s2, %s233
      $region32: #{eegnet_siamese_forward.1} parent=19 // pred_fallthru
        _
      // Predicated region
      $region33: #{eegnet_siamese_forward.1} parent=19 // pred_check
        %p235 = pneg %p110
      $region34: #{eegnet_siamese_forward.1} parent=19 // pred_check_branch
        %237 = sbr.rel (%p235) target = $region36
      $region35: #{eegnet_siamese_forward.1} parent=19 // pred_region
        %p238 = scmp.lt.s32.totalorder %s12, 1
        %s239 = scalar_select %p238, %s12, 1
        %s240 = smul.addr %s239, 32
        %s241 = smul.addr %s240, 4
        %s242 = scalar_lea.vmem %s3, %s241
      $region36: #{eegnet_siamese_forward.1} parent=19 // pred_fallthru
        _
      // Predicated region
      $region37: #{eegnet_siamese_forward.1} parent=19 // pred_check
        %p243 = pneg %p136
      $region38: #{eegnet_siamese_forward.1} parent=19 // pred_check_branch
        %245 = sbr.rel (%p243) target = $region40
      $region39: #{eegnet_siamese_forward.1} parent=19 // pred_region
        %p246 = scmp.lt.s32.totalorder %s12, 1
        %s247 = scalar_select %p246, %s12, 1
        %s248 = smul.addr %s247, 16
        %s249 = smul.addr %s248, 4
        %s250 = scalar_lea.vmem %s4, %s249
      $region40: #{eegnet_siamese_forward.1} parent=19 // pred_fallthru
        _
    $region20: #{eegnet_siamese_forward.1} parent=5 // pred_fallthru
      _
    %p251 = scmp.le.s32.totalorder 1, %s12
    %p252 = scmp.lt.s32.totalorder %s12, 3
    %p253 = pnand %p251, %p252
    %p254 = pneg %p253
    // Predicated region
    $region41: #{eegnet_siamese_forward.1} parent=5 // pred_check
      _
    $region42: #{eegnet_siamese_forward.1} parent=5 // pred_check_branch
      %256 = sbr.rel (%p253) target = $region44
    $region43: #{eegnet_siamese_forward.1} parent=5 // pred_region
      %s257 = ssub.s32 %s12, 1
      %p258 = scmp.lt.s32.totalorder %s17, 1
      %s259 = scalar_select %p258, %s17, 1
      %s260 = smul.addr %s259, 2
      %s261 = smul.addr %s260, 8
      %s262 = scalar_lea.vmem %s0, %s261
      %p263 = pneg %p38
      %p264 = pneg %p35
      %p265 = scmp.lt.s32.totalorder %s17, 1
      %s266 = scalar_select %p265, %s17, 1
      %s267 = smul.addr %s266, 4
      %s268 = smul.addr %s267, 8
      %s269 = scalar_lea.vmem %s1, %s268
      %p270 = pneg %p64
      %p271 = pneg %p61
      %p272 = scmp.lt.s32.totalorder %s17, 1
      %s273 = scalar_select %p272, %s17, 1
      %s274 = smul.addr %s273, 2
      %s275 = smul.addr %s274, 8
      %s276 = scalar_lea.vmem %s2, %s275
      %p277 = pneg %p90
      %p278 = pneg %p87
      %p279 = scmp.lt.s32.totalorder %s17, 1
      %s280 = scalar_select %p279, %s17, 1
      %s281 = smul.addr %s280, 32
      %s282 = smul.addr %s281, 4
      %s283 = scalar_lea.vmem %s3, %s282
      %p284 = pneg %p116
      %p285 = pneg %p113
      %p286 = scmp.lt.s32.totalorder %s17, 1
      %s287 = scalar_select %p286, %s17, 1
      %s288 = smul.addr %s287, 16
      %s289 = smul.addr %s288, 4
      %s290 = scalar_lea.vmem %s4, %s289
      %p291 = pneg %p142
      %p292 = pneg %p139
      %p293 = pneg %p163
      %p294 = pneg %p160
      %p295 = pneg %p189
      %p296 = pneg %p186
      %p297 = scmp.lt.s32.totalorder %s17, 1
      %s298 = scalar_select %p297, %s17, 1
      %s299 = smul.addr %s298, 2
      %s300 = smul.addr %s299, 8
      %s301 = scalar_lea.vmem %s6, %s300
      %p302 = scmp.lt.s32.totalorder %s17, 1
      %s303 = scalar_select %p302, %s17, 1
      %s304 = smul.addr %s303, 2
      %s305 = smul.addr %s304, 8
      %s306 = scalar_lea.vmem %s0, %s305
      %p307 = scmp.lt.s32.totalorder %s17, 1
      %s308 = scalar_select %p307, %s17, 1
      %s309 = smul.addr %s308, 4
      %s310 = smul.addr %s309, 8
      %s311 = scalar_lea.vmem %s1, %s310
      %p312 = scmp.lt.s32.totalorder %s17, 1
      %s313 = scalar_select %p312, %s17, 1
      %s314 = smul.addr %s313, 2
      %s315 = smul.addr %s314, 8
      %s316 = scalar_lea.vmem %s2, %s315
      %p317 = scmp.lt.s32.totalorder %s17, 1
      %s318 = scalar_select %p317, %s17, 1
      %s319 = smul.addr %s318, 32
      %s320 = smul.addr %s319, 4
      %s321 = scalar_lea.vmem %s3, %s320
      %p322 = scmp.lt.s32.totalorder %s17, 1
      %s323 = scalar_select %p322, %s17, 1
      %s324 = smul.addr %s323, 16
      %s325 = smul.addr %s324, 4
      %s326 = scalar_lea.vmem %s4, %s325
      %p327 = scmp.lt.s32.totalorder %s17, 1
      %s328 = scalar_select %p327, %s17, 1
      %s329 = smul.addr %s328, 2
      %s330 = smul.addr %s329, 8
      %s331 = scalar_lea.vmem %s6, %s330
      %v333 = vld [vmem:[%s306] sm:$0xff]
      %v334 = vld [vmem:[%s306 + $0x8] sm:$0xff]
      %v335 = vld [vmem:[%s311] sm:$0xff]
      %v336 = vld [vmem:[%s311 + $0x8] sm:$0xff]
      %s337 = scalar_lea.vmem %s311, 16
      %v338 = vld [vmem:[%s337] sm:$0xff]
      %v339 = vld [vmem:[%s337 + $0x8] sm:$0xff]
      %v340 = vld [vmem:[%s316] sm:$0xff]
      %v341 = vld [vmem:[%s316 + $0x8] sm:$0xff]
      %v342 = vld [vmem:[%s321] sm:$0xf]
      %v343 = vld [vmem:[%s321 + $0x4] sm:$0xf]
      %v344 = vld [vmem:[%s321 + $0x8] sm:$0xf]
      %v345 = vld [vmem:[%s321 + $0xc] sm:$0xf]
      %v346 = vld [vmem:[%s321 + $0x10] sm:$0xf]
      %v347 = vld [vmem:[%s321 + $0x14] sm:$0xf]
      %v348 = vld [vmem:[%s321 + $0x18] sm:$0xf]
      %v349 = vld [vmem:[%s321 + $0x1c] sm:$0xf]
      %v350 = vld [vmem:[%s321 + $0x20] sm:$0xf]
      %v351 = vld [vmem:[%s321 + $0x24] sm:$0xf]
      %v352 = vld [vmem:[%s321 + $0x28] sm:$0xf]
      %v353 = vld [vmem:[%s321 + $0x2c] sm:$0xf]
      %v354 = vld [vmem:[%s321 + $0x30] sm:$0xf]
      %v355 = vld [vmem:[%s321 + $0x34] sm:$0xf]
      %v356 = vld [vmem:[%s321 + $0x38] sm:$0xf]
      %v357 = vld [vmem:[%s321 + $0x3c] sm:$0xf]
      %v358 = vld [vmem:[%s321 + $0x40] sm:$0xf]
      %v359 = vld [vmem:[%s321 + $0x44] sm:$0xf]
      %v360 = vld [vmem:[%s321 + $0x48] sm:$0xf]
      %v361 = vld [vmem:[%s321 + $0x4c] sm:$0xf]
      %v362 = vld [vmem:[%s321 + $0x50] sm:$0xf]
      %v363 = vld [vmem:[%s321 + $0x54] sm:$0xf]
      %v364 = vld [vmem:[%s321 + $0x58] sm:$0xf]
      %v365 = vld [vmem:[%s321 + $0x5c] sm:$0xf]
      %v366 = vld [vmem:[%s321 + $0x60] sm:$0xf]
      %v367 = vld [vmem:[%s321 + $0x64] sm:$0xf]
      %v368 = vld [vmem:[%s321 + $0x68] sm:$0xf]
      %v369 = vld [vmem:[%s321 + $0x6c] sm:$0xf]
      %v370 = vld [vmem:[%s321 + $0x70] sm:$0xf]
      %v371 = vld [vmem:[%s321 + $0x74] sm:$0xf]
      %v372 = vld [vmem:[%s321 + $0x78] sm:$0xf]
      %v373 = vld [vmem:[%s321 + $0x7c] sm:$0xf]
      %v374 = vld [vmem:[%s326] sm:$0xf]
      %v375 = vld [vmem:[%s326 + $0x4] sm:$0xf]
      %v376 = vld [vmem:[%s326 + $0x8] sm:$0xf]
      %v377 = vld [vmem:[%s326 + $0xc] sm:$0xf]
      %v378 = vld [vmem:[%s326 + $0x10] sm:$0xf]
      %v379 = vld [vmem:[%s326 + $0x14] sm:$0xf]
      %v380 = vld [vmem:[%s326 + $0x18] sm:$0xf]
      %v381 = vld [vmem:[%s326 + $0x1c] sm:$0xf]
      %v382 = vld [vmem:[%s326 + $0x20] sm:$0xf]
      %v383 = vld [vmem:[%s326 + $0x24] sm:$0xf]
      %v384 = vld [vmem:[%s326 + $0x28] sm:$0xf]
      %v385 = vld [vmem:[%s326 + $0x2c] sm:$0xf]
      %v386 = vld [vmem:[%s326 + $0x30] sm:$0xf]
      %v387 = vld [vmem:[%s326 + $0x34] sm:$0xf]
      %v388 = vld [vmem:[%s326 + $0x38] sm:$0xf]
      %v389 = vld [vmem:[%s326 + $0x3c] sm:$0xf]
      %v390 = vld [vmem:[%s5] sm:$0xff]
      %v391 = vld [vmem:[%s5 + $0x8] sm:$0xff]
      %v392 = vld [vmem:[%s5 + $0x10] sm:$0xff]
      %v393 = vld [vmem:[%s5 + $0x18] sm:$0xff]
      %v394 = vld [vmem:[%s5 + $0x20] sm:$0xff]
      %v395 = vld [vmem:[%s5 + $0x28] sm:$0xff]
      %v396 = vld [vmem:[%s5 + $0x30] sm:$0xff]
      %v397 = vld [vmem:[%s5 + $0x38] sm:$0xff]
      %v398 = vld [vmem:[%s5 + $0x40] sm:$0xff]
      %v399 = vld [vmem:[%s5 + $0x48] sm:$0xff]
      %vm400 = vcmask 130048
      %v402 = vsel %vm400, %v335, 0
      %v405 = vsel %vm400, %v336, 0
      %407 = vmatpush.msra.mxu0 0.0
      %408 = vmatpush.msra.mxu0 0.0
      %409 = vmatpush.msra.mxu0 0.0
      %410 = vmatpush.msra.mxu0 0.0
      %411 = vmatpush.msra.mxu0 0.0
      %412 = vmatpush.msra.mxu0 0.0
      %413 = vmatpush.msra.mxu0 0.0
      %414 = vmatpush.msra.mxu0 0.0
      %415 = vmatpush.msra.mxu0 0.0
      %416 = vmatpush.msra.mxu0 0.0
      %417 = vmatpush.msra.mxu0 0.0
      %418 = vmatpush.msra.mxu0 0.0
      %419 = vmatpush.msra.mxu0 0.0
      %420 = vmatpush.msra.mxu0 0.0
      %421 = vmatpush.msra.mxu0 %v334
      %422 = vmatpush.msra.mxu0 %v333
      %423 = vmatmul.f32.gmra.mxu0 %v402
      %v424 = vpop.f32.mrf.mxu0
      %v425 = vadd.f32 0.0, %v424
      %426 = vmatmul.f32.gmra.mxu0 %v405
      %v427 = vpop.f32.mrf.mxu0
      %v428 = vadd.f32 0.0, %v427
      %429 = vdwg.mxu0
      %v432 = vrot.slane %v425, 4
      %v433 = vrot.slane %v428, 4
      %v436 = vpack.c.bf16 %v425, %v425
      %v437 = vpack.c.bf16 %v432, %v432
      %v438 = vpack.c.bf16 %v428, %v428
      %v439 = vpack.c.bf16 %v433, %v433
      %v448 = vunpack.c.l.b16 %v342
      %v449 = vunpack.c.l.b16 %v343
      %v450 = vunpack.c.l.b16 %v344
      %v451 = vunpack.c.l.b16 %v345
      %v452 = vunpack.c.l.b16 %v346
      %v453 = vunpack.c.l.b16 %v347
      %v454 = vunpack.c.l.b16 %v348
      %v455 = vunpack.c.l.b16 %v349
      %v456 = vpack.c.b16 %v449, %v448
      %v457 = vpack.c.b16 %v451, %v450
      %v458 = vpack.c.b16 %v453, %v452
      %v459 = vpack.c.b16 %v455, %v454
      %vm464 = vcmask 523264
      %v466 = vsel %vm464, %v436, 0
      %468 = vmatpush.bf16.msra.mxu0 0
      %469 = vmatpush.bf16.msra.mxu0 0
      %470 = vmatpush.bf16.msra.mxu0 0
      %471 = vmatpush.bf16.msra.mxu0 0
      %472 = vmatpush.bf16.msra.mxu0 %v459
      %473 = vmatpush.bf16.msra.mxu0 %v458
      %474 = vmatpush.bf16.msra.mxu0 %v457
      %475 = vmatpush.bf16.msra.mxu0 %v456
      %476 = vmatmul.bf16.gmra.mxu0 %v466
      %v477 = vpop.f32.mrf.mxu0
      %v478 = vadd.f32 0.0, %v477
      %v479 = vpop.f32.mrf.mxu0
      %480 = vdwg.mxu0
      %v489 = vunpack.c.l.b16 %v350
      %v490 = vunpack.c.l.b16 %v351
      %v491 = vunpack.c.l.b16 %v352
      %v492 = vunpack.c.l.b16 %v353
      %v493 = vunpack.c.l.b16 %v354
      %v494 = vunpack.c.l.b16 %v355
      %v495 = vunpack.c.l.b16 %v356
      %v496 = vunpack.c.l.b16 %v357
      %v497 = vpack.c.b16 %v490, %v489
      %v498 = vpack.c.b16 %v492, %v491
      %v499 = vpack.c.b16 %v494, %v493
      %v500 = vpack.c.b16 %v496, %v495
      %v506 = vsel %vm464, %v437, 0
      %508 = vmatpush.bf16.msra.mxu0 0
      %509 = vmatpush.bf16.msra.mxu0 0
      %510 = vmatpush.bf16.msra.mxu0 0
      %511 = vmatpush.bf16.msra.mxu0 0
      %512 = vmatpush.bf16.msra.mxu0 %v500
      %513 = vmatpush.bf16.msra.mxu0 %v499
      %514 = vmatpush.bf16.msra.mxu0 %v498
      %515 = vmatpush.bf16.msra.mxu0 %v497
      %516 = vmatmul.bf16.gmra.mxu0 %v506
      %v517 = vpop.f32.mrf.mxu0
      %v518 = vadd.f32 0.0, %v517
      %v519 = vpop.f32.mrf.mxu0
      %520 = vdwg.mxu0
      %v529 = vunpack.c.l.b16 %v358
      %v530 = vunpack.c.l.b16 %v359
      %v531 = vunpack.c.l.b16 %v360
      %v532 = vunpack.c.l.b16 %v361
      %v533 = vunpack.c.l.b16 %v362
      %v534 = vunpack.c.l.b16 %v363
      %v535 = vunpack.c.l.b16 %v364
      %v536 = vunpack.c.l.b16 %v365
      %v537 = vpack.c.b16 %v530, %v529
      %v538 = vpack.c.b16 %v532, %v531
      %v539 = vpack.c.b16 %v534, %v533
      %v540 = vpack.c.b16 %v536, %v535
      %v546 = vsel %vm464, %v438, 0
      %548 = vmatpush.bf16.msra.mxu0 0
      %549 = vmatpush.bf16.msra.mxu0 0
      %550 = vmatpush.bf16.msra.mxu0 0
      %551 = vmatpush.bf16.msra.mxu0 0
      %552 = vmatpush.bf16.msra.mxu0 %v540
      %553 = vmatpush.bf16.msra.mxu0 %v539
      %554 = vmatpush.bf16.msra.mxu0 %v538
      %555 = vmatpush.bf16.msra.mxu0 %v537
      %556 = vmatmul.bf16.gmra.mxu0 %v546
      %v557 = vpop.f32.mrf.mxu0
      %v558 = vadd.f32 0.0, %v557
      %v559 = vpop.f32.mrf.mxu0
      %560 = vdwg.mxu0
      %v569 = vunpack.c.l.b16 %v366
      %v570 = vunpack.c.l.b16 %v367
      %v571 = vunpack.c.l.b16 %v368
      %v572 = vunpack.c.l.b16 %v369
      %v573 = vunpack.c.l.b16 %v370
      %v574 = vunpack.c.l.b16 %v371
      %v575 = vunpack.c.l.b16 %v372
      %v576 = vunpack.c.l.b16 %v373
      %v577 = vpack.c.b16 %v570, %v569
      %v578 = vpack.c.b16 %v572, %v571
      %v579 = vpack.c.b16 %v574, %v573
      %v580 = vpack.c.b16 %v576, %v575
      %v586 = vsel %vm464, %v439, 0
      %588 = vmatpush.bf16.msra.mxu0 0
      %589 = vmatpush.bf16.msra.mxu0 0
      %590 = vmatpush.bf16.msra.mxu0 0
      %591 = vmatpush.bf16.msra.mxu0 0
      %592 = vmatpush.bf16.msra.mxu0 %v580
      %593 = vmatpush.bf16.msra.mxu0 %v579
      %594 = vmatpush.bf16.msra.mxu0 %v578
      %595 = vmatpush.bf16.msra.mxu0 %v577
      %596 = vmatmul.bf16.gmra.mxu0 %v586
      %v597 = vpop.f32.mrf.mxu0
      %v598 = vadd.f32 0.0, %v597
      %v599 = vpop.f32.mrf.mxu0
      %600 = vdwg.mxu0
      %602 = vset.pattern.permute.xlu0 0
      %603 = vperm.xlu0 %602, %v340
      %v604 = vpop.permute.xlu0 %603
      %606 = vset.pattern.permute.xlu0 0
      %607 = vperm.xlu0 %606, %v341
      %v608 = vpop.permute.xlu0 %607
      %v610 = vunpack.c.l.s4 839922192
      %v611 = vunpack.c.0.s8 %v610
      %v612 = vperm.slane %v604, %v611
      %v614 = vunpack.c.l.s4 1985246804
      %v615 = vunpack.c.0.s8 %v614
      %v616 = vperm.slane %v604, %v615
      %v618 = vunpack.c.l.s4 839922192
      %v619 = vunpack.c.0.s8 %v618
      %v620 = vperm.slane %v608, %v619
      %v622 = vunpack.c.l.s4 1985246804
      %v623 = vunpack.c.0.s8 %v622
      %v624 = vperm.slane %v608, %v623
      %v629 = vadd.f32 %v478, %v612
      %v630 = vadd.f32 %v518, %v616
      %v631 = vadd.f32 %v558, %v620
      %v632 = vadd.f32 %v598, %v624
      %vm633 = vcmp.gt.f32.partialorder %v629, 0.0
      %vm634 = vcmp.gt.f32.partialorder %v630, 0.0
      %vm635 = vcmp.gt.f32.partialorder %v631, 0.0
      %vm636 = vcmp.gt.f32.partialorder %v632, 0.0
      %v637 = vmin.f32 %v629, 0.0
      %v638 = vmin.f32 %v630, 0.0
      %v639 = vmin.f32 %v631, 0.0
      %v640 = vmin.f32 %v632, 0.0
      %v641 = vmul.f32 %v637, 1.442695
      %v642 = vpow.pop %v641
      %v643 = vmul.f32 %v638, 1.442695
      %v644 = vpow.pop %v643
      %v645 = vmul.f32 %v639, 1.442695
      %v646 = vpow.pop %v645
      %v647 = vmul.f32 %v640, 1.442695
      %v648 = vpow.pop %v647
      %v649 = vsub.f32 %v642, 1.0
      %v650 = vsub.f32 %v644, 1.0
      %v651 = vsub.f32 %v646, 1.0
      %v652 = vsub.f32 %v648, 1.0
      %v653 = vsel %vm633, %v629, %v649
      %v654 = vsel %vm634, %v630, %v650
      %v655 = vsel %vm635, %v631, %v651
      %v656 = vsel %vm636, %v632, %v652
      %661 = vst [vmem:[#allocation1] ss:$2 sm:$0xff] %v653
      %s662 = scalar_lea.vmem [#allocation1], 1
      %663 = vst [vmem:[%s662] ss:$2 sm:$0xff] %v654
      %s664 = scalar_lea.vmem [#allocation1], 16
      %665 = vst [vmem:[%s664] ss:$2 sm:$0xff] %v655
      %s666 = scalar_lea.vmem [#allocation1], 17
      %667 = vst [vmem:[%s666] ss:$2 sm:$0xff] %v656
      %v668 = vld.sshfl [vmem:[#allocation1] sm:$0xff pattern:$0x75316420]
      %v669 = vld.sshfl [vmem:[#allocation1 + $0x10] sm:$0xff pattern:$0x75316420]
      %v670 = vsel %vm464, %v668, 0
      %v672 = vsel %vm464, %v669, 0
      %674 = vmatpush.msra.mxu0 0.0
      %675 = vmatpush.msra.mxu0 0.0
      %676 = vmatpush.msra.mxu0 0.0
      %677 = vmatpush.msra.mxu0 0.0
      %678 = vmatpush.msra.mxu0 0.0
      %679 = vmatpush.msra.mxu0 0.0
      %680 = vmatpush.msra.mxu0 0.0
      %681 = vmatpush.msra.mxu0 0.0
      %682 = vmatpush.msra.mxu0 %v397
      %683 = vmatpush.msra.mxu0 %v396
      %684 = vmatpush.msra.mxu0 %v395
      %685 = vmatpush.msra.mxu0 %v394
      %686 = vmatpush.msra.mxu0 %v393
      %687 = vmatpush.msra.mxu0 %v392
      %688 = vmatpush.msra.mxu0 %v391
      %689 = vmatpush.msra.mxu0 %v390
      %690 = vmatmul.f32.gmra.mxu0 %v670
      %v691 = vpop.f32.mrf.mxu0
      %v692 = vadd.f32 0.0, %v691
      %693 = vmatmul.f32.gmra.mxu0 %v672
      %v694 = vpop.f32.mrf.mxu0
      %v695 = vadd.f32 0.0, %v694
      %696 = vdwg.mxu0
      %v699 = vrot.slane %v692, 2
      %v700 = vrot.slane %v692, 4
      %v701 = vrot.slane %v692, 6
      %v702 = vrot.slane %v695, 2
      %v703 = vrot.slane %v695, 4
      %v704 = vrot.slane %v695, 6
      %v711 = vpack.c.bf16 %v692, %v692
      %v712 = vpack.c.bf16 %v699, %v699
      %v713 = vpack.c.bf16 %v700, %v700
      %v714 = vpack.c.bf16 %v701, %v701
      %v715 = vpack.c.bf16 %v695, %v695
      %v716 = vpack.c.bf16 %v702, %v702
      %v717 = vpack.c.bf16 %v703, %v703
      %v718 = vpack.c.bf16 %v704, %v704
      %v721 = vunpack.c.l.b16 %v374
      %v722 = vunpack.c.l.b16 %v375
      %v723 = vpack.c.b16 %v722, %v721
      %v726 = vsel %vm400, %v711, 0
      %728 = vmatpush.bf16.msra.mxu0 0
      %729 = vmatpush.bf16.msra.mxu0 0
      %730 = vmatpush.bf16.msra.mxu0 0
      %731 = vmatpush.bf16.msra.mxu0 0
      %732 = vmatpush.bf16.msra.mxu0 0
      %733 = vmatpush.bf16.msra.mxu0 0
      %734 = vmatpush.bf16.msra.mxu0 0
      %735 = vmatpush.bf16.msra.mxu0 %v723
      %736 = vmatmul.bf16.gmra.mxu0 %v726
      %v737 = vpop.f32.mrf.mxu0
      %v738 = vadd.f32 0.0, %v737
      %v739 = vpop.f32.mrf.mxu0
      %740 = vdwg.mxu0
      %v743 = vunpack.c.l.b16 %v376
      %v744 = vunpack.c.l.b16 %v377
      %v745 = vpack.c.b16 %v744, %v743
      %v748 = vsel %vm400, %v712, 0
      %750 = vmatpush.bf16.msra.mxu0 0
      %751 = vmatpush.bf16.msra.mxu0 0
      %752 = vmatpush.bf16.msra.mxu0 0
      %753 = vmatpush.bf16.msra.mxu0 0
      %754 = vmatpush.bf16.msra.mxu0 0
      %755 = vmatpush.bf16.msra.mxu0 0
      %756 = vmatpush.bf16.msra.mxu0 0
      %757 = vmatpush.bf16.msra.mxu0 %v745
      %758 = vmatmul.bf16.gmra.mxu0 %v748
      %v759 = vpop.f32.mrf.mxu0
      %v760 = vadd.f32 0.0, %v759
      %v761 = vpop.f32.mrf.mxu0
      %762 = vdwg.mxu0
      %v765 = vunpack.c.l.b16 %v378
      %v766 = vunpack.c.l.b16 %v379
      %v767 = vpack.c.b16 %v766, %v765
      %v770 = vsel %vm400, %v713, 0
      %772 = vmatpush.bf16.msra.mxu0 0
      %773 = vmatpush.bf16.msra.mxu0 0
      %774 = vmatpush.bf16.msra.mxu0 0
      %775 = vmatpush.bf16.msra.mxu0 0
      %776 = vmatpush.bf16.msra.mxu0 0
      %777 = vmatpush.bf16.msra.mxu0 0
      %778 = vmatpush.bf16.msra.mxu0 0
      %779 = vmatpush.bf16.msra.mxu0 %v767
      %780 = vmatmul.bf16.gmra.mxu0 %v770
      %v781 = vpop.f32.mrf.mxu0
      %v782 = vadd.f32 0.0, %v781
      %v783 = vpop.f32.mrf.mxu0
      %784 = vdwg.mxu0
      %v787 = vunpack.c.l.b16 %v380
      %v788 = vunpack.c.l.b16 %v381
      %v789 = vpack.c.b16 %v788, %v787
      %v792 = vsel %vm400, %v714, 0
      %794 = vmatpush.bf16.msra.mxu0 0
      %795 = vmatpush.bf16.msra.mxu0 0
      %796 = vmatpush.bf16.msra.mxu0 0
      %797 = vmatpush.bf16.msra.mxu0 0
      %798 = vmatpush.bf16.msra.mxu0 0
      %799 = vmatpush.bf16.msra.mxu0 0
      %800 = vmatpush.bf16.msra.mxu0 0
      %801 = vmatpush.bf16.msra.mxu0 %v789
      %802 = vmatmul.bf16.gmra.mxu0 %v792
      %v803 = vpop.f32.mrf.mxu0
      %v804 = vadd.f32 0.0, %v803
      %v805 = vpop.f32.mrf.mxu0
      %806 = vdwg.mxu0
      %v809 = vunpack.c.l.b16 %v382
      %v810 = vunpack.c.l.b16 %v383
      %v811 = vpack.c.b16 %v810, %v809
      %v814 = vsel %vm400, %v715, 0
      %816 = vmatpush.bf16.msra.mxu0 0
      %817 = vmatpush.bf16.msra.mxu0 0
      %818 = vmatpush.bf16.msra.mxu0 0
      %819 = vmatpush.bf16.msra.mxu0 0
      %820 = vmatpush.bf16.msra.mxu0 0
      %821 = vmatpush.bf16.msra.mxu0 0
      %822 = vmatpush.bf16.msra.mxu0 0
      %823 = vmatpush.bf16.msra.mxu0 %v811
      %824 = vmatmul.bf16.gmra.mxu0 %v814
      %v825 = vpop.f32.mrf.mxu0
      %v826 = vadd.f32 0.0, %v825
      %v827 = vpop.f32.mrf.mxu0
      %828 = vdwg.mxu0
      %v831 = vunpack.c.l.b16 %v384
      %v832 = vunpack.c.l.b16 %v385
      %v833 = vpack.c.b16 %v832, %v831
      %v836 = vsel %vm400, %v716, 0
      %838 = vmatpush.bf16.msra.mxu0 0
      %839 = vmatpush.bf16.msra.mxu0 0
      %840 = vmatpush.bf16.msra.mxu0 0
      %841 = vmatpush.bf16.msra.mxu0 0
      %842 = vmatpush.bf16.msra.mxu0 0
      %843 = vmatpush.bf16.msra.mxu0 0
      %844 = vmatpush.bf16.msra.mxu0 0
      %845 = vmatpush.bf16.msra.mxu0 %v833
      %846 = vmatmul.bf16.gmra.mxu0 %v836
      %v847 = vpop.f32.mrf.mxu0
      %v848 = vadd.f32 0.0, %v847
      %v849 = vpop.f32.mrf.mxu0
      %850 = vdwg.mxu0
      %v853 = vunpack.c.l.b16 %v386
      %v854 = vunpack.c.l.b16 %v387
      %v855 = vpack.c.b16 %v854, %v853
      %v858 = vsel %vm400, %v717, 0
      %860 = vmatpush.bf16.msra.mxu0 0
      %861 = vmatpush.bf16.msra.mxu0 0
      %862 = vmatpush.bf16.msra.mxu0 0
      %863 = vmatpush.bf16.msra.mxu0 0
      %864 = vmatpush.bf16.msra.mxu0 0
      %865 = vmatpush.bf16.msra.mxu0 0
      %866 = vmatpush.bf16.msra.mxu0 0
      %867 = vmatpush.bf16.msra.mxu0 %v855
      %868 = vmatmul.bf16.gmra.mxu0 %v858
      %v869 = vpop.f32.mrf.mxu0
      %v870 = vadd.f32 0.0, %v869
      %v871 = vpop.f32.mrf.mxu0
      %872 = vdwg.mxu0
      %v875 = vunpack.c.l.b16 %v388
      %v876 = vunpack.c.l.b16 %v389
      %v877 = vpack.c.b16 %v876, %v875
      %v880 = vsel %vm400, %v718, 0
      %882 = vmatpush.bf16.msra.mxu0 0
      %883 = vmatpush.bf16.msra.mxu0 0
      %884 = vmatpush.bf16.msra.mxu0 0
      %885 = vmatpush.bf16.msra.mxu0 0
      %886 = vmatpush.bf16.msra.mxu0 0
      %887 = vmatpush.bf16.msra.mxu0 0
      %888 = vmatpush.bf16.msra.mxu0 0
      %889 = vmatpush.bf16.msra.mxu0 %v877
      %890 = vmatmul.bf16.gmra.mxu0 %v880
      %v891 = vpop.f32.mrf.mxu0
      %v892 = vadd.f32 0.0, %v891
      %v893 = vpop.f32.mrf.mxu0
      %894 = vdwg.mxu0
      %895 = vset.pattern.permute.xlu0 1
      %896 = vperm.xlu0 %895, %v340
      %v897 = vpop.permute.xlu0 %896
      %899 = vset.pattern.permute.xlu0 1
      %900 = vperm.xlu0 %899, %v341
      %v901 = vpop.permute.xlu0 %900
      %911 = vst [vmem:[#allocation1] ss:$4 sm:$0xff] %v738
      %s912 = scalar_lea.vmem [#allocation1], 1
      %913 = vst [vmem:[%s912] ss:$4 sm:$0xff] %v760
      %s914 = scalar_lea.vmem [#allocation1], 2
      %915 = vst [vmem:[%s914] ss:$4 sm:$0xff] %v782
      %s916 = scalar_lea.vmem [#allocation1], 3
      %917 = vst [vmem:[%s916] ss:$4 sm:$0xff] %v804
      %s918 = scalar_lea.vmem [#allocation1], 32
      %919 = vst [vmem:[%s918] ss:$4 sm:$0xff] %v826
      %s920 = scalar_lea.vmem [#allocation1], 33
      %921 = vst [vmem:[%s920] ss:$4 sm:$0xff] %v848
      %s922 = scalar_lea.vmem [#allocation1], 34
      %923 = vst [vmem:[%s922] ss:$4 sm:$0xff] %v870
      %s924 = scalar_lea.vmem [#allocation1], 35
      %925 = vst [vmem:[%s924] ss:$4 sm:$0xff] %v892
      %v926 = vld.sshfl [vmem:[#allocation1] sm:$0xff pattern:$0x73625140]
      %v927 = vld.sshfl [vmem:[#allocation1 + $0x20] sm:$0xff pattern:$0x73625140]
      %v931 = vsel %vm400, %v338, 0
      %v934 = vsel %vm400, %v339, 0
      %936 = vmatpush.msra.mxu0 0.0
      %937 = vmatpush.msra.mxu0 0.0
      %938 = vmatpush.msra.mxu0 0.0
      %939 = vmatpush.msra.mxu0 0.0
      %940 = vmatpush.msra.mxu0 0.0
      %941 = vmatpush.msra.mxu0 0.0
      %942 = vmatpush.msra.mxu0 0.0
      %943 = vmatpush.msra.mxu0 0.0
      %944 = vmatpush.msra.mxu0 0.0
      %945 = vmatpush.msra.mxu0 0.0
      %946 = vmatpush.msra.mxu0 0.0
      %947 = vmatpush.msra.mxu0 0.0
      %948 = vmatpush.msra.mxu0 0.0
      %949 = vmatpush.msra.mxu0 0.0
      %950 = vmatpush.msra.mxu0 %v927
      %951 = vmatpush.msra.mxu0 %v926
      %952 = vmatmul.f32.gmra.mxu0 %v931
      %v953 = vpop.f32.mrf.mxu0
      %v954 = vadd.f32 %v897, %v953
      %955 = vmatmul.f32.gmra.mxu0 %v934
      %v956 = vpop.f32.mrf.mxu0
      %v957 = vadd.f32 %v901, %v956
      %958 = vdwg.mxu0
      %vm959 = vcmp.gt.f32.partialorder %v954, 0.0
      %vm960 = vcmp.gt.f32.partialorder %v957, 0.0
      %v961 = vmin.f32 %v954, 0.0
      %v962 = vmin.f32 %v957, 0.0
      %v963 = vmul.f32 %v961, 1.442695
      %v964 = vpow.pop %v963
      %v965 = vmul.f32 %v962, 1.442695
      %v966 = vpow.pop %v965
      %v967 = vsub.f32 %v964, 1.0
      %v968 = vsub.f32 %v966, 1.0
      %v969 = vsel %vm959, %v954, %v967
      %v970 = vsel %vm960, %v957, %v968
      %v972 = vsel %vm400, %v969, 0
      %v975 = vsel %vm400, %v970, 0
      %977 = vmatpush.msra.mxu0 0.0
      %978 = vmatpush.msra.mxu0 0.0
      %979 = vmatpush.msra.mxu0 0.0
      %980 = vmatpush.msra.mxu0 0.0
      %981 = vmatpush.msra.mxu0 0.0
      %982 = vmatpush.msra.mxu0 0.0
      %983 = vmatpush.msra.mxu0 0.0
      %984 = vmatpush.msra.mxu0 0.0
      %985 = vmatpush.msra.mxu0 0.0
      %986 = vmatpush.msra.mxu0 0.0
      %987 = vmatpush.msra.mxu0 0.0
      %988 = vmatpush.msra.mxu0 0.0
      %989 = vmatpush.msra.mxu0 0.0
      %990 = vmatpush.msra.mxu0 0.0
      %991 = vmatpush.msra.mxu0 %v399
      %992 = vmatpush.msra.mxu0 %v398
      %993 = vmatmul.f32.gmra.mxu0 %v972
      %v994 = vpop.f32.mrf.mxu0
      %v995 = vadd.f32 0.0, %v994
      %996 = vmatmul.f32.gmra.mxu0 %v975
      %v997 = vpop.f32.mrf.mxu0
      %v998 = vadd.f32 0.0, %v997
      %999 = vdwg.mxu0
      %vm1000 = vcmask 15360
      %1001 = vst.msk [vmem:[%s331] sm:$0xff] %vm1000, %v995
      %1002 = vst.msk [vmem:[%s331 + $0x8] sm:$0xff] %vm1000, %v998
      %p1003 = scmp.lt.s32.totalorder %s17, 1
      %s1004 = scalar_select %p1003, %s17, 1
      %s1005 = smul.addr %s1004, 2
      %s1006 = smul.addr %s1005, 8
      %s1007 = scalar_lea.vmem %s6, %s1006
      // Predicated region
      $region45: #{eegnet_siamese_forward.1} parent=43 // pred_check
        %p1008 = pneg %p186
      $region46: #{eegnet_siamese_forward.1} parent=43 // pred_check_branch
        %1010 = sbr.rel (%p1008) target = $region48
      $region47: #{eegnet_siamese_forward.1} parent=43 // pred_region
        _
      $region48: #{eegnet_siamese_forward.1} parent=43 // pred_fallthru
        _
    $region44: #{eegnet_siamese_forward.1} parent=5 // pred_fallthru
      _
    %p1011 = scmp.le.s32.totalorder 2, %s12
    // Predicated region
    $region49: #{eegnet_siamese_forward.1} parent=5 // pred_check
      %p1012 = pneg %p1011
    $region50: #{eegnet_siamese_forward.1} parent=5 // pred_check_branch
      %1014 = sbr.rel (%p1012) target = $region52
    $region51: #{eegnet_siamese_forward.1} parent=5 // pred_region
      %s1015 = ssub.s32 %s12, 2
      // Predicated region
      $region53: #{eegnet_siamese_forward.1} parent=51 // pred_check
        %p1016 = pneg %p192
      $region54: #{eegnet_siamese_forward.1} parent=51 // pred_check_branch
        %1018 = sbr.rel (%p1016) target = $region56
      $region55: #{eegnet_siamese_forward.1} parent=51 // pred_region
        %p1019 = scmp.lt.s32.totalorder %s18, 1
        %s1020 = scalar_select %p1019, %s18, 1
        %s1021 = smul.addr %s1020, 2
        %s1022 = smul.addr %s1021, 8
        %s1023 = scalar_lea.vmem %s6, %s1022
      $region56: #{eegnet_siamese_forward.1} parent=51 // pred_fallthru
        _
    $region52: #{eegnet_siamese_forward.1} parent=5 // pred_fallthru
      _
  $region6: #{eegnet_siamese_forward.1} parent=0 // loop_footer
    %s16 = sadd.s32 1, %s12
  $region7: #{eegnet_siamese_forward.1} parent=0 // loop_footer_branch
    %11 = sbr.rel target = $region3
  $region8: #{eegnet_siamese_forward.1} parent=0 // loop_exit
    _

</llo_original>
